<compile_context>
chip_gen: v7x
topology: tpu7x:2x2x1
jax: 0.10.0
libtpu: 0.0.40
codegen_flags: <defaults>
</compile_context>

<pallas_src>
import functools

import jax
import jax.numpy as jnp
from jax import lax
from jax.experimental import pallas as pl
from jax.experimental.pallas import tpu as pltpu


def _round_up(n, m):
    return ((n + m - 1) // m) * m


def _same_pad_conv_kernel(x_ref, xh_ref, w_ref, b_ref, o_ref, xtap_ref,
                          *, k_taps, dilation):
    # x_ref   : (C_in_p, l_tile)        main input tile (bf16), padded coords
    # xh_ref  : (C_in_p, halo_blk)      right-halo tile (next halo_blk lanes)
    # w_ref   : (C_out_p, K*C_in_p)     tap-flattened weights (bf16)
    # b_ref   : (C_out_p, 1)            bias (f32)
    # o_ref   : (C_out_p, l_tile)       output tile
    # xtap_ref: (K*C_in_p, l_tile)      scratch: tap-stacked MXU operand
    c_in_p, l_tile = x_ref.shape

    # Stack the K dilated taps along the contraction (sublane) axis so the
    # whole conv is a single matmul of depth K*C_in_p instead of K shallow
    # ones.  Each tap needs two stores at most: the lane-shifted body from the
    # main tile and the spill-over from the halo tile.  K is small & static,
    # so this Python loop fully unrolls.
    for k in range(k_taps):
        s = k * dilation                # static lane shift for this tap
        r0 = k * c_in_p                 # sublane-aligned row block (c_in_p % 8 == 0)
        if s == 0:
            xtap_ref[r0:r0 + c_in_p, :] = x_ref[...]
        else:
            if s < l_tile:
                xtap_ref[r0:r0 + c_in_p, :l_tile - s] = x_ref[:, s:]
            xtap_ref[r0:r0 + c_in_p, l_tile - s:] = xh_ref[:, :s]

    acc = jnp.dot(w_ref[...], xtap_ref[...], preferred_element_type=jnp.float32)
    o_ref[...] = (acc + b_ref[...]).astype(o_ref.dtype)


def same_pad_conv(x, weight, bias, *, dilation=1, l_tile=1024,
                  compute_dtype=jnp.bfloat16):
    """x: (B, C_in, L) NCL.  weight: (C_out, C_in, K).  bias: (C_out,).
    Returns (B, C_out, L), matching the PyTorch SamePadConv forward (groups=1):
    Conv1d with padding=receptive_field//2 and the trailing element trimmed
    when the receptive field is even (the trim is implicit: we emit exactly L
    outputs starting at t=0 of the padded signal)."""
    # TODO(synk): grouped convolution (groups > 1) is not implemented; this
    # kernel covers the module's default groups=1.
    B, C_in, L = x.shape
    C_out, c_in_w, K = weight.shape
    assert c_in_w == C_in, "groups != 1 not supported"

    receptive_field = (K - 1) * dilation + 1
    pad = receptive_field // 2            # left "same" pad
    halo = (K - 1) * dilation             # extra lanes a window needs past its start

    halo_blk = _round_up(max(halo, 1), 128)
    l_tile = min(l_tile, _round_up(L, 128))
    l_tile = _round_up(max(l_tile, halo_blk), halo_blk)
    num_l = pl.cdiv(L, l_tile)
    l_out_pad = num_l * l_tile
    l_in_pad = l_out_pad + halo_blk

    c_in_p = _round_up(C_in, 8)
    c_out_p = _round_up(C_out, 8)

    # Wrapper glue: one fused zero-pad (same-pad + tile alignment + channel
    # alignment) and bf16 cast.  The halo itself is provided by a second
    # blocked view of this array inside the kernel, not by another data copy.
    x_p = jnp.pad(
        x, ((0, 0), (0, c_in_p - C_in), (pad, l_in_pad - pad - L))
    ).astype(compute_dtype)

    # weight (C_out, C_in, K) -> (C_out_p, K*C_in_p); column = k*C_in_p + c_in,
    # matching the tap-stacked activation layout built in the kernel.
    w_t = jnp.transpose(weight, (0, 2, 1))                        # (C_out, K, C_in)
    w_t = jnp.pad(w_t, ((0, c_out_p - C_out), (0, 0), (0, c_in_p - C_in)))
    w_flat = w_t.reshape(c_out_p, K * c_in_p).astype(compute_dtype)
    b_p = jnp.pad(bias, (0, c_out_p - C_out)).reshape(c_out_p, 1).astype(jnp.float32)

    ratio = l_tile // halo_blk            # halo blocks per L tile

    kernel = functools.partial(_same_pad_conv_kernel, k_taps=K, dilation=dilation)

    out_p = pl.pallas_call(
        kernel,
        out_shape=jax.ShapeDtypeStruct((B, c_out_p, l_out_pad), x.dtype),
        grid_spec=pltpu.PrefetchScalarGridSpec(
            num_scalar_prefetch=0,
            grid=(B, num_l),
            in_specs=[
                # main L tile of the padded input (batch dim squeezed)
                pl.BlockSpec((None, c_in_p, l_tile), lambda b, l: (b, 0, l)),
                # right halo: the halo_blk lanes immediately after the main tile
                pl.BlockSpec((None, c_in_p, halo_blk),
                             lambda b, l: (b, 0, (l + 1) * ratio)),
                # weights / bias: constant index map -> DMA'd once, reused
                pl.BlockSpec((c_out_p, K * c_in_p), lambda b, l: (0, 0)),
                pl.BlockSpec((c_out_p, 1), lambda b, l: (0, 0)),
            ],
            out_specs=pl.BlockSpec((None, c_out_p, l_tile), lambda b, l: (b, 0, l)),
            scratch_shapes=[
                pltpu.VMEM((K * c_in_p, l_tile), compute_dtype),
            ],
        ),
        compiler_params=pltpu.CompilerParams(
            # Every (batch, L-tile) grid cell is independent -> both parallel,
            # so megacore / v7x dual-TC can shard either axis.
            dimension_semantics=("parallel", "parallel")),
    )(x_p, x_p, w_flat, b_p)

    return out_p[:, :C_out, :L]


def _reference_same_pad_conv(x, weight, bias, *, dilation=1,
                             compute_dtype=jnp.bfloat16):
    """Pure-JAX reference mirroring torch.nn.Conv1d + trailing trim, using the
    same bf16-multiply / f32-accumulate numerics as the kernel."""
    K = weight.shape[-1]
    receptive_field = (K - 1) * dilation + 1
    pad = receptive_field // 2
    out = lax.conv_general_dilated(
        x.astype(compute_dtype), weight.astype(compute_dtype),
        window_strides=(1,), padding=[(pad, pad)], rhs_dilation=(dilation,),
        dimension_numbers=("NCH", "OIH", "NCH"),
        preferred_element_type=jnp.float32,
    )
    out = (out + bias[None, :, None].astype(jnp.float32)).astype(x.dtype)
    if receptive_field % 2 == 0:
        out = out[:, :, :-1]
    return out


if __name__ == "__main__":
    B, C_in, C_out, L = 2, 4, 6, 16

    key = jax.random.PRNGKey(0)
    kx, key = jax.random.split(key)
    x = jax.random.normal(kx, (B, C_in, L), dtype=jnp.float32)

    for (K, dilation) in ((4, 1),    # even receptive field -> exercises the trim
                          (3, 2)):   # odd receptive field, dilated
        kcfg = jax.random.fold_in(key, 10 * K + dilation)
        kw_i, kb_i = jax.random.split(kcfg)
        # PyTorch Conv1d default init: U(-bound, bound), bound = 1/sqrt(C_in*K)
        bound = 1.0 / (C_in * K) ** 0.5
        weight = jax.random.uniform(kw_i, (C_out, C_in, K), jnp.float32, -bound, bound)
        bias = jax.random.uniform(kb_i, (C_out,), jnp.float32, -bound, bound)

        out = same_pad_conv(x, weight, bias, dilation=dilation)
        jax.block_until_ready(out)

        ref = _reference_same_pad_conv(x, weight, bias, dilation=dilation)
        assert out.shape == (B, C_out, L), out.shape
        err = float(jnp.max(jnp.abs(out - ref)))
        assert jnp.allclose(out, ref, atol=1e-2, rtol=1e-2), err

    print("KERNEL_OK")
</pallas_src>

<mosaic_0001>
module attributes {stable_mosaic.version = 11 : i64} {
  func.func @_same_pad_conv_kernel(%arg0: i32, %arg1: i32, %arg2: memref<1x8x128xbf16, #tpu.memory_space<vmem>>, %arg3: memref<1x8x128xbf16, #tpu.memory_space<vmem>>, %arg4: memref<8x32xbf16, #tpu.memory_space<vmem>>, %arg5: memref<8x1xf32, #tpu.memory_space<vmem>>, %arg6: memref<1x8x128xf32, #tpu.memory_space<vmem>>, %arg7: memref<32x128xbf16, #tpu.memory_space<vmem>>) attributes {dimension_semantics = [#tpu.dimension_semantics<parallel>, #tpu.dimension_semantics<parallel>], iteration_bounds = array<i64: 2, 1>, scalar_prefetch = 0 : i64, scratch_operands = 1 : i64, tpu.core_type = #tpu.core_type<tc>, window_params = [{transform_indices = @transform_0, window_bounds = array<i64: 1, 8, 128>}, {transform_indices = @transform_1, window_bounds = array<i64: 1, 8, 128>}, {pipeline_mode = #tpu.pipeline_mode<synchronous>, transform_indices = @transform_2, window_bounds = array<i64: 8, 32>}, {pipeline_mode = #tpu.pipeline_mode<synchronous>, transform_indices = @transform_3, window_bounds = array<i64: 8, 1>}, {transform_indices = @transform_4, window_bounds = array<i64: 1, 8, 128>}]} {
    %c0 = arith.constant 0 : index
    %c0_0 = arith.constant 0 : index
    %c0_1 = arith.constant 0 : index
    %0 = vector.load %arg2[%c0, %c0_0, %c0_1] : memref<1x8x128xbf16, #tpu.memory_space<vmem>>, vector<1x8x128xbf16>
    %1 = vector.shape_cast %0 : vector<1x8x128xbf16> to vector<8x128xbf16>
    %c0_2 = arith.constant 0 : index
    %c0_3 = arith.constant 0 : index
    %2 = vector.load %arg7[%c0_2, %c0_3] : memref<32x128xbf16, #tpu.memory_space<vmem>>, vector<8x128xbf16>
    tpu.vector_store %arg7[%c0_2, %c0_3], %1 {strides = array<i32>} : memref<32x128xbf16, #tpu.memory_space<vmem>>, vector<8x128xbf16>,
    %c0_4 = arith.constant 0 : index
    %c0_5 = arith.constant 0 : index
    %c1 = arith.constant 1 : index
    %3 = vector.load %arg2[%c0_4, %c0_5, %c1] : memref<1x8x128xbf16, #tpu.memory_space<vmem>>, vector<1x8x127xbf16>
    %4 = vector.shape_cast %3 : vector<1x8x127xbf16> to vector<8x127xbf16>
    %c8 = arith.constant 8 : index
    %c0_6 = arith.constant 0 : index
    %5 = vector.load %arg7[%c8, %c0_6] : memref<32x128xbf16, #tpu.memory_space<vmem>>, vector<8x127xbf16>
    tpu.vector_store %arg7[%c8, %c0_6], %4 {strides = array<i32>} : memref<32x128xbf16, #tpu.memory_space<vmem>>, vector<8x127xbf16>,
    %c0_7 = arith.constant 0 : index
    %c0_8 = arith.constant 0 : index
    %c0_9 = arith.constant 0 : index
    %6 = vector.load %arg3[%c0_7, %c0_8, %c0_9] : memref<1x8x128xbf16, #tpu.memory_space<vmem>>, vector<1x8x1xbf16>
    %7 = vector.shape_cast %6 : vector<1x8x1xbf16> to vector<8x1xbf16>
    %c8_10 = arith.constant 8 : index
    %c127 = arith.constant 127 : index
    %8 = vector.load %arg7[%c8_10, %c127] : memref<32x128xbf16, #tpu.memory_space<vmem>>, vector<8x1xbf16>
    tpu.vector_store %arg7[%c8_10, %c127], %7 {strides = array<i32>} : memref<32x128xbf16, #tpu.memory_space<vmem>>, vector<8x1xbf16>,
    %c0_11 = arith.constant 0 : index
    %c0_12 = arith.constant 0 : index
    %c2 = arith.constant 2 : index
    %9 = vector.load %arg2[%c0_11, %c0_12, %c2] : memref<1x8x128xbf16, #tpu.memory_space<vmem>>, vector<1x8x126xbf16>
    %10 = vector.shape_cast %9 : vector<1x8x126xbf16> to vector<8x126xbf16>
    %c16 = arith.constant 16 : index
    %c0_13 = arith.constant 0 : index
    %11 = vector.load %arg7[%c16, %c0_13] : memref<32x128xbf16, #tpu.memory_space<vmem>>, vector<8x126xbf16>
    tpu.vector_store %arg7[%c16, %c0_13], %10 {strides = array<i32>} : memref<32x128xbf16, #tpu.memory_space<vmem>>, vector<8x126xbf16>,
    %c0_14 = arith.constant 0 : index
    %c0_15 = arith.constant 0 : index
    %c0_16 = arith.constant 0 : index
    %12 = vector.load %arg3[%c0_14, %c0_15, %c0_16] : memref<1x8x128xbf16, #tpu.memory_space<vmem>>, vector<1x8x2xbf16>
    %13 = vector.shape_cast %12 : vector<1x8x2xbf16> to vector<8x2xbf16>
    %c16_17 = arith.constant 16 : index
    %c126 = arith.constant 126 : index
    %14 = vector.load %arg7[%c16_17, %c126] : memref<32x128xbf16, #tpu.memory_space<vmem>>, vector<8x2xbf16>
    tpu.vector_store %arg7[%c16_17, %c126], %13 {strides = array<i32>} : memref<32x128xbf16, #tpu.memory_space<vmem>>, vector<8x2xbf16>,
    %c0_18 = arith.constant 0 : index
    %c0_19 = arith.constant 0 : index
    %c3 = arith.constant 3 : index
    %15 = vector.load %arg2[%c0_18, %c0_19, %c3] : memref<1x8x128xbf16, #tpu.memory_space<vmem>>, vector<1x8x125xbf16>
    %16 = vector.shape_cast %15 : vector<1x8x125xbf16> to vector<8x125xbf16>
    %c24 = arith.constant 24 : index
    %c0_20 = arith.constant 0 : index
    %17 = vector.load %arg7[%c24, %c0_20] : memref<32x128xbf16, #tpu.memory_space<vmem>>, vector<8x125xbf16>
    tpu.vector_store %arg7[%c24, %c0_20], %16 {strides = array<i32>} : memref<32x128xbf16, #tpu.memory_space<vmem>>, vector<8x125xbf16>,
    %c0_21 = arith.constant 0 : index
    %c0_22 = arith.constant 0 : index
    %c0_23 = arith.constant 0 : index
    %18 = vector.load %arg3[%c0_21, %c0_22, %c0_23] : memref<1x8x128xbf16, #tpu.memory_space<vmem>>, vector<1x8x3xbf16>
    %19 = vector.shape_cast %18 : vector<1x8x3xbf16> to vector<8x3xbf16>
    %c24_24 = arith.constant 24 : index
    %c125 = arith.constant 125 : index
    %20 = vector.load %arg7[%c24_24, %c125] : memref<32x128xbf16, #tpu.memory_space<vmem>>, vector<8x3xbf16>
    tpu.vector_store %arg7[%c24_24, %c125], %19 {strides = array<i32>} : memref<32x128xbf16, #tpu.memory_space<vmem>>, vector<8x3xbf16>,
    %c0_25 = arith.constant 0 : index
    %c0_26 = arith.constant 0 : index
    %21 = vector.load %arg4[%c0_25, %c0_26] : memref<8x32xbf16, #tpu.memory_space<vmem>>, vector<8x32xbf16>
    %c0_27 = arith.constant 0 : index
    %c0_28 = arith.constant 0 : index
    %22 = vector.load %arg7[%c0_27, %c0_28] : memref<32x128xbf16, #tpu.memory_space<vmem>>, vector<32x128xbf16>
    %cst = arith.constant dense<0.000000e+00> : vector<8x128xf32>
    %23 = tpu.matmul %21, %22, %cst {dimension_numbers = #tpu.dot_dimension_numbers<[1], [0], [0], [1], [0, 0, 1, 1], [], []>} : vector<8x32xbf16>, vector<32x128xbf16>, vector<8x128xf32> -> vector<8x128xf32>
    %c0_29 = arith.constant 0 : index
    %c0_30 = arith.constant 0 : index
    %24 = vector.load %arg5[%c0_29, %c0_30] : memref<8x1xf32, #tpu.memory_space<vmem>>, vector<8x1xf32>
    %25 = vector.broadcast %24 : vector<8x1xf32> to vector<8x128xf32>
    %26 = arith.addf %23, %25 : vector<8x128xf32>
    %c0_31 = arith.constant 0 : index
    %c0_32 = arith.constant 0 : index
    %c0_33 = arith.constant 0 : index
    %27 = vector.load %arg6[%c0_31, %c0_32, %c0_33] : memref<1x8x128xf32, #tpu.memory_space<vmem>>, vector<1x8x128xf32>
    %28 = vector.shape_cast %27 : vector<1x8x128xf32> to vector<8x128xf32>
    %29 = vector.shape_cast %26 : vector<8x128xf32> to vector<1x8x128xf32>
    tpu.vector_store %arg6[%c0_31, %c0_32, %c0_33], %29 {strides = array<i32>} : memref<1x8x128xf32, #tpu.memory_space<vmem>>, vector<1x8x128xf32>,
    return
  }
  func.func @transform_0(%arg0: i32, %arg1: i32) -> (i32, i32, i32) {
    %c0_i32 = arith.constant 0 : i32
    %c0_i32_0 = arith.constant 0 : i32
    return %arg0, %c0_i32, %arg1 : i32, i32, i32
  }
  func.func @transform_1(%arg0: i32, %arg1: i32) -> (i32, i32, i32) {
    %c1_i32 = arith.constant 1 : i32
    %0 = arith.addi %arg1, %c1_i32 : i32
    %c1_i32_0 = arith.constant 1 : i32
    %1 = arith.muli %0, %c1_i32_0 : i32
    %c0_i32 = arith.constant 0 : i32
    %c0_i32_1 = arith.constant 0 : i32
    return %arg0, %c0_i32, %1 : i32, i32, i32
  }
  func.func @transform_2(%arg0: i32, %arg1: i32) -> (i32, i32) {
    %c0_i32 = arith.constant 0 : i32
    %c0_i32_0 = arith.constant 0 : i32
    %c0_i32_1 = arith.constant 0 : i32
    return %c0_i32, %c0_i32_0 : i32, i32
  }
  func.func @transform_3(%arg0: i32, %arg1: i32) -> (i32, i32) {
    %c0_i32 = arith.constant 0 : i32
    %c0_i32_0 = arith.constant 0 : i32
    %c0_i32_1 = arith.constant 0 : i32
    return %c0_i32, %c0_i32_0 : i32, i32
  }
  func.func @transform_4(%arg0: i32, %arg1: i32) -> (i32, i32, i32) {
    %c0_i32 = arith.constant 0 : i32
    %c0_i32_0 = arith.constant 0 : i32
    return %arg0, %c0_i32, %arg1 : i32, i32, i32
  }
}

</mosaic_0001>

<llo_original>
// kernel: tpu_custom_call.1
$region0: #{tpu_custom_call.1}
  #allocation0 [shape = 'u32[]', space=smem, size = 0x4, offset = 0x4, fixed_abs, tag = 'smem constant byte address 0x4 - core index']
  #allocation1 [shape = 'u32[144,128]{1,0:T(1,128)}', space=vmem, size = 0x12000, scoped, tag = 'internal scratch']
  #allocation2 [shape = 'bf16[32,128]{1,0:T(16,128)(2,1)}', space=vmem, size = 0x2000, scoped, tag = 'scratch operand']
  %s0 = inlined_call_operand.hbm [shape: bf16[2,8,256], index: 0, kind: input, shape index: {}]
  %s1 = inlined_call_operand.hbm [shape: bf16[2,8,256], index: 1, kind: input, shape index: {}]
  %s2 = inlined_call_operand.vmem [shape: bf16[8,32], index: 2, kind: input, shape index: {}]
  %s3 = inlined_call_operand.vmem [shape: f32[8,1], index: 3, kind: input, shape index: {}]
  %s4 = inlined_call_operand.hbm [shape: f32[2,8,128], index: 4, kind: output, shape index: {}]
  %s5 = sld [smem:[#allocation0]]
  $region57: #{tpu_custom_call.1} parent=0
    _
  %s7 = ssub.s32 1, %s5
  %s8 = scalar_select 0, %s7, %s5
  $region1: #{tpu_custom_call.1} parent=0
    #allocation3 [shape = 'u8[4096]{0}', space=vmem, size = 0x1000, scoped, tag = 'input window, operand 0']
    #allocation4 [shape = 's32[2]{0}', space=sflag, size = 0x8, scoped, tag = 'scoped memory for tpu_custom_call.1']
    #allocation5 [shape = 's32[2]{0}', space=sflag, size = 0x8, scoped, tag = 'scoped memory for tpu_custom_call.1']
    #allocation6 [shape = 'u8[4096]{0}', space=vmem, size = 0x1000, scoped, tag = 'input window, operand 1']
    #allocation7 [shape = 's32[2]{0}', space=sflag, size = 0x8, scoped, tag = 'scoped memory for tpu_custom_call.1']
    #allocation8 [shape = 'u8[8192]{0}', space=vmem, size = 0x2000, scoped, tag = 'output window, operand 0']
    %9 = vsyncpa [#allocation4], 0
    %s10 = scalar_lea.sflag [#allocation4], 1
    %11 = vsyncpa %s10, 0
    %12 = vsyncpa [#allocation7], 0
    %s13 = scalar_lea.sflag [#allocation7], 1
    %14 = vsyncpa %s13, 0
    %15 = vsyncpa [#allocation5], 0
    %s16 = scalar_lea.sflag [#allocation5], 1
    %17 = vsyncpa %s16, 0
    loop: start=0, step=1, limit=4
    $region2: #{tpu_custom_call.1} parent=1 // loop_pre_header
      _
    $region3: #{tpu_custom_call.1} parent=1 // loop_header
      %s19 = sphi 0, %s23
      %p20 = scmp.ge.s32.totalorder %s19, 4
      %s26 = sphi 0, %s38
      %s27 = sphi 0, %s34
      %s28 = sphi 0, %s26
      %s29 = sphi 0, %s27
      %s30 = sphi 0, %s28
      %s31 = sphi 0, %s29
      %s43 = sphi 0, %s45
      %s46 = sphi 0, %s43
      %s47 = sphi 0, %s46
      %s63 = sphi 0, %s47
      %s73 = sphi 0, %s75
      %s76 = sphi 0, %s73
      %s77 = sphi 0, %s76
      %s93 = sphi 0, %s77
      %s97 = sphi 0, %s97
      %s99 = sphi 0, %s97
      %s100 = sphi 0, %s99
      %s114 = sphi 0, %s100
      %s118 = sphi 0, %s118
      %s120 = sphi 0, %s118
      %s121 = sphi 0, %s120
      %s135 = sphi 0, %s121
      %s143 = sphi 0, %s145
      %s146 = sphi 0, %s143
      %s147 = sphi 0, %s146
      %s163 = sphi 0, %s147
    $region4: #{tpu_custom_call.1} parent=1 // loop_header_branch
      %22 = sbr.rel (%p20) target = $region8
    $region5: #{tpu_custom_call.1} parent=1 // loop_body
      %s24 = ssub.s32 %s19, 1
      %s25 = ssub.s32 %s19, 2
      %s32 = sadd.s32 1, %s27
      %p33 = scmp.ge.s32.totalorder %s32, 1
      %s34 = scalar_select %p33, 0, %s32
      %s35 = sadd.s32 1, %s26
      %s36 = scalar_select %p33, %s35, %s26
      %p37 = scmp.ge.s32.totalorder %s36, 2
      %s38 = scalar_select %p37, 0, %s36
      %s39 = ssub.s32 %s26, %s38
      %s40 = ssub.s32 %s27, %s34
      %s41 = sor.u32 %s39, %s40
      %p42 = scmp.eq.s32.totalorder %s41, 0
      %s44 = sadd.s32 %s43, 1
      %s45 = scalar_select %p42, %s43, %s44
      %p48 = pneg %p42
      %p49 = scmp.eq.s32.totalorder %s19, 1
      %p50 = por %p48, %p49
      %p51 = scmp.ne.s32.totalorder %s43, %s46
      %p52 = scmp.eq.s32.totalorder %s19, 0
      %p53 = por %p51, %p52
      %p54 = scmp.ne.s32.totalorder %s43, %s46
      %p55 = scmp.eq.s32.totalorder %s24, 1
      %p56 = por %p54, %p55
      %p57 = scmp.ne.s32.totalorder %s46, %s47
      %p58 = scmp.eq.s32.totalorder %s24, 0
      %p59 = por %p57, %p58
      %p60 = scmp.ne.s32.totalorder %s46, %s47
      %p61 = scmp.eq.s32.totalorder %s25, 1
      %p62 = por %p60, %p61
      %p64 = scmp.ne.s32.totalorder %s47, %s63
      %p65 = scmp.eq.s32.totalorder %s25, 0
      %p66 = por %p64, %p65
      %s67 = sadd.s32 %s27, 1
      %s68 = sadd.s32 %s34, 1
      %s69 = ssub.s32 %s26, %s38
      %s70 = ssub.s32 %s67, %s68
      %s71 = sor.u32 %s69, %s70
      %p72 = scmp.eq.s32.totalorder %s71, 0
      %s74 = sadd.s32 %s73, 1
      %s75 = scalar_select %p72, %s73, %s74
      %p78 = pneg %p72
      %p79 = scmp.eq.s32.totalorder %s19, 1
      %p80 = por %p78, %p79
      %p81 = scmp.ne.s32.totalorder %s73, %s76
      %p82 = scmp.eq.s32.totalorder %s19, 0
      %p83 = por %p81, %p82
      %p84 = scmp.ne.s32.totalorder %s73, %s76
      %p85 = scmp.eq.s32.totalorder %s24, 1
      %p86 = por %p84, %p85
      %p87 = scmp.ne.s32.totalorder %s76, %s77
      %p88 = scmp.eq.s32.totalorder %s24, 0
      %p89 = por %p87, %p88
      %p90 = scmp.ne.s32.totalorder %s76, %s77
      %p91 = scmp.eq.s32.totalorder %s25, 1
      %p92 = por %p90, %p91
      %p94 = scmp.ne.s32.totalorder %s77, %s93
      %p95 = scmp.eq.s32.totalorder %s25, 0
      %p96 = por %p94, %p95
      %s98 = sadd.s32 %s97, 1
      %p101 = scmp.eq.s32.totalorder %s19, 1
      %p102 = scmp.ne.s32.totalorder %s97, %s99
      %p103 = scmp.eq.s32.totalorder %s19, 0
      %p104 = por %p102, %p103
      %p105 = scmp.ne.s32.totalorder %s97, %s99
      %p106 = scmp.eq.s32.totalorder %s24, 1
      %p107 = por %p105, %p106
      %p108 = scmp.ne.s32.totalorder %s99, %s100
      %p109 = scmp.eq.s32.totalorder %s24, 0
      %p110 = por %p108, %p109
      %p111 = scmp.ne.s32.totalorder %s99, %s100
      %p112 = scmp.eq.s32.totalorder %s25, 1
      %p113 = por %p111, %p112
      %p115 = scmp.ne.s32.totalorder %s100, %s114
      %p116 = scmp.eq.s32.totalorder %s25, 0
      %p117 = por %p115, %p116
      %s119 = sadd.s32 %s118, 1
      %p122 = scmp.eq.s32.totalorder %s19, 1
      %p123 = scmp.ne.s32.totalorder %s118, %s120
      %p124 = scmp.eq.s32.totalorder %s19, 0
      %p125 = por %p123, %p124
      %p126 = scmp.ne.s32.totalorder %s118, %s120
      %p127 = scmp.eq.s32.totalorder %s24, 1
      %p128 = por %p126, %p127
      %p129 = scmp.ne.s32.totalorder %s120, %s121
      %p130 = scmp.eq.s32.totalorder %s24, 0
      %p131 = por %p129, %p130
      %p132 = scmp.ne.s32.totalorder %s120, %s121
      %p133 = scmp.eq.s32.totalorder %s25, 1
      %p134 = por %p132, %p133
      %p136 = scmp.ne.s32.totalorder %s121, %s135
      %p137 = scmp.eq.s32.totalorder %s25, 0
      %p138 = por %p136, %p137
      %s139 = ssub.s32 %s26, %s38
      %s140 = ssub.s32 %s27, %s34
      %s141 = sor.u32 %s139, %s140
      %p142 = scmp.eq.s32.totalorder %s141, 0
      %s144 = sadd.s32 %s143, 1
      %s145 = scalar_select %p142, %s143, %s144
      %p148 = pneg %p142
      %p149 = scmp.eq.s32.totalorder %s19, 1
      %p150 = por %p148, %p149
      %p151 = scmp.ne.s32.totalorder %s143, %s146
      %p152 = scmp.eq.s32.totalorder %s19, 0
      %p153 = por %p151, %p152
      %p154 = scmp.ne.s32.totalorder %s143, %s146
      %p155 = scmp.eq.s32.totalorder %s24, 1
      %p156 = por %p154, %p155
      %p157 = scmp.ne.s32.totalorder %s146, %s147
      %p158 = scmp.eq.s32.totalorder %s24, 0
      %p159 = por %p157, %p158
      %p160 = scmp.ne.s32.totalorder %s146, %s147
      %p161 = scmp.eq.s32.totalorder %s25, 1
      %p162 = por %p160, %p161
      %p164 = scmp.ne.s32.totalorder %s147, %s163
      %p165 = scmp.eq.s32.totalorder %s25, 0
      %p166 = por %p164, %p165
      %p167 = scmp.le.s32.totalorder 1, %s19
      %p168 = scmp.lt.s32.totalorder %s19, 3
      %p169 = pnand %p167, %p168
      %p170 = pneg %p169
      // Predicated region
      $region9: #{tpu_custom_call.1} parent=5 // pred_check
        _
      $region10: #{tpu_custom_call.1} parent=5 // pred_check_branch
        %172 = sbr.rel (%p169) target = $region12
      $region11: #{tpu_custom_call.1} parent=5 // pred_region
        %s173 = ssub.s32 %s19, 1
        // Predicated region
        $region13: #{tpu_custom_call.1} parent=11 // pred_check
          %p174 = pneg %p110
        $region14: #{tpu_custom_call.1} parent=11 // pred_check_branch
          %176 = sbr.rel (%p174) target = $region16
        $region15: #{tpu_custom_call.1} parent=11 // pred_region
          _
        $region16: #{tpu_custom_call.1} parent=11 // pred_fallthru
          _
        // Predicated region
        $region17: #{tpu_custom_call.1} parent=11 // pred_check
          %p177 = pneg %p131
        $region18: #{tpu_custom_call.1} parent=11 // pred_check_branch
          %179 = sbr.rel (%p177) target = $region20
        $region19: #{tpu_custom_call.1} parent=11 // pred_region
          _
        $region20: #{tpu_custom_call.1} parent=11 // pred_fallthru
          _
      $region12: #{tpu_custom_call.1} parent=5 // pred_fallthru
        _
      %p180 = scmp.lt.s32.totalorder %s19, 2
      // Predicated region
      $region21: #{tpu_custom_call.1} parent=5 // pred_check
        %p181 = pneg %p180
      $region22: #{tpu_custom_call.1} parent=5 // pred_check_branch
        %183 = sbr.rel (%p181) target = $region24
      $region23: #{tpu_custom_call.1} parent=5 // pred_region
        // Predicated region
        $region25: #{tpu_custom_call.1} parent=23 // pred_check
          %p184 = pneg %p53
        $region26: #{tpu_custom_call.1} parent=23 // pred_check_branch
          %186 = sbr.rel (%p184) target = $region28
        $region27: #{tpu_custom_call.1} parent=23 // pred_region
          %s187 = sand.u32 %s43, 1
          %s188 = scalar_lea.sflag [#allocation4], %s187
          %s189 = sand.u32 %s43, 1
          %s190 = smul.addr %s189, 4
          %s191 = scalar_lea.vmem [#allocation3], %s190
          %s193 = ssub.s32 64, 64
          %194 = vsyncadd %s188, %s193
          %s195 = smul.addr %s26, 2
          %s196 = sadd.s32 %s27, %s195
          %s197 = smul.addr %s196, 64
          %s198 = scalar_lea.hbm %s0, %s197
          %s200 = sshll.u32 %s191, 4
          %s201 = int_to_ptr.vmem [resolvable:$true] %s200
          %203 = dma.hbm_to_vmem [thread:$0]  %s198, 64, %s201, %s188
        $region28: #{tpu_custom_call.1} parent=23 // pred_fallthru
          _
        // Predicated region
        $region29: #{tpu_custom_call.1} parent=23 // pred_check
          %p204 = pneg %p83
        $region30: #{tpu_custom_call.1} parent=23 // pred_check_branch
          %206 = sbr.rel (%p204) target = $region32
        $region31: #{tpu_custom_call.1} parent=23 // pred_region
          %s207 = sand.u32 %s73, 1
          %s208 = scalar_lea.sflag [#allocation7], %s207
          %s209 = sand.u32 %s73, 1
          %s210 = smul.addr %s209, 4
          %s211 = scalar_lea.vmem [#allocation6], %s210
          %s212 = sadd.s32 %s27, 1
          %s214 = ssub.s32 64, 64
          %215 = vsyncadd %s208, %s214
          %s216 = smul.addr %s26, 2
          %s217 = sadd.s32 %s212, %s216
          %s218 = smul.addr %s217, 64
          %s219 = scalar_lea.hbm %s1, %s218
          %s221 = sshll.u32 %s211, 4
          %s222 = int_to_ptr.vmem [resolvable:$true] %s221
          %224 = dma.hbm_to_vmem [thread:$0]  %s219, 64, %s222, %s208
        $region32: #{tpu_custom_call.1} parent=23 // pred_fallthru
          _
      $region24: #{tpu_custom_call.1} parent=5 // pred_fallthru
        _
      %p225 = scmp.le.s32.totalorder 1, %s19
      %p226 = scmp.lt.s32.totalorder %s19, 3
      %p227 = pnand %p225, %p226
      %p228 = pneg %p227
      // Predicated region
      $region33: #{tpu_custom_call.1} parent=5 // pred_check
        _
      $region34: #{tpu_custom_call.1} parent=5 // pred_check_branch
        %230 = sbr.rel (%p227) target = $region36
      $region35: #{tpu_custom_call.1} parent=5 // pred_region
        %s231 = ssub.s32 %s19, 1
        %s232 = sand.u32 %s46, 1
        %s233 = scalar_lea.sflag [#allocation4], %s232
        %s234 = sand.u32 %s46, 1
        %s235 = smul.addr %s234, 4
        %s236 = scalar_lea.vmem [#allocation3], %s235
        // Predicated region
        $region37: #{tpu_custom_call.1} parent=35 // pred_check
          %p237 = pneg %p59
        $region38: #{tpu_custom_call.1} parent=35 // pred_check_branch
          %239 = sbr.rel (%p237) target = $region40
        $region39: #{tpu_custom_call.1} parent=35 // pred_region
          %240 = dma.done %s233, 64
        $region40: #{tpu_custom_call.1} parent=35 // pred_fallthru
          _
        %s241 = sand.u32 %s76, 1
        %s242 = scalar_lea.sflag [#allocation7], %s241
        %s243 = sand.u32 %s76, 1
        %s244 = smul.addr %s243, 4
        %s245 = scalar_lea.vmem [#allocation6], %s244
        // Predicated region
        $region41: #{tpu_custom_call.1} parent=35 // pred_check
          %p246 = pneg %p89
        $region42: #{tpu_custom_call.1} parent=35 // pred_check_branch
          %248 = sbr.rel (%p246) target = $region44
        $region43: #{tpu_custom_call.1} parent=35 // pred_region
          %249 = dma.done %s242, 64
        $region44: #{tpu_custom_call.1} parent=35 // pred_fallthru
          _
        %s250 = sand.u32 %s46, 1
        %s251 = scalar_lea.sflag [#allocation4], %s250
        %s252 = sand.u32 %s46, 1
        %s253 = smul.addr %s252, 4
        %s254 = scalar_lea.vmem [#allocation3], %s253
        %p255 = pneg %p59
        %p256 = pneg %p56
        %s257 = sand.u32 %s76, 1
        %s258 = scalar_lea.sflag [#allocation7], %s257
        %s259 = sand.u32 %s76, 1
        %s260 = smul.addr %s259, 4
        %s261 = scalar_lea.vmem [#allocation6], %s260
        %p262 = pneg %p89
        %p263 = pneg %p86
        %p264 = pneg %p110
        %p265 = pneg %p107
        %p266 = pneg %p131
        %p267 = pneg %p128
        %p268 = pneg %p159
        %p269 = pneg %p156
        %s270 = sand.u32 %s146, 1
        %s271 = scalar_lea.sflag [#allocation5], %s270
        %s272 = sand.u32 %s146, 1
        %s273 = smul.addr %s272, 8
        %s274 = scalar_lea.vmem [#allocation8], %s273
        %s275 = sadd.s32 %s29, 1
        %v277 = vld [vmem:[%s236] sm:$0xf]
        %278 = vst [vmem:[#allocation2] sm:$0xf] %v277
        %v279 = vld [vmem:[%s236] sm:$0xf]
        %v281 = vunpack.c.l.b16 %v279
        %v282 = vpack.c.b16 %v281, %v281
        %283 = vrot.lane.b32.xlu0 %v282, 127
        %v284 = vpop.permute.xlu0 %283
        %vm286 = vcmask 1039364
        %287 = vst.msk [vmem:[#allocation2] sm:$0xf0] %vm286, %v284
        %v288 = vld [vmem:[%s245] sm:$0xf]
        %v290 = vunpack.c.l.b16 %v288
        %v291 = vpack.c.b16 %v290, %v290
        %292 = vrot.lane.b32.xlu0 %v291, 127
        %v293 = vpop.permute.xlu0 %292
        %vm295 = vcmask 1048572
        %296 = vst.msk [vmem:[#allocation2] sm:$0xf0] %vm295, %v293
        %v297 = vld [vmem:[%s236] sm:$0xf]
        %v299 = vunpack.c.l.b16 %v297
        %v300 = vpack.c.b16 %v299, %v299
        %301 = vrot.lane.b32.xlu0 %v300, 126
        %v302 = vpop.permute.xlu0 %301
        %vm304 = vcmask 1027072
        %305 = vst.msk [vmem:[#allocation2 + $0x8] sm:$0xf] %vm304, %v302
        %v306 = vld [vmem:[%s245] sm:$0xf]
        %v308 = vunpack.c.l.b16 %v306
        %v309 = vpack.c.b16 %v308, %v308
        %310 = vrot.lane.b32.xlu0 %v309, 126
        %v311 = vpop.permute.xlu0 %310
        %vm313 = vcmask 1044464
        %314 = vst.msk [vmem:[#allocation2 + $0x8] sm:$0xf] %vm313, %v311
        %v315 = vld [vmem:[%s236] sm:$0xf]
        %v317 = vunpack.c.l.b16 %v315
        %v318 = vpack.c.b16 %v317, %v317
        %319 = vrot.lane.b32.xlu0 %v318, 125
        %v320 = vpop.permute.xlu0 %319
        %vm322 = vcmask 1022980
        %323 = vst.msk [vmem:[#allocation2 + $0x8] sm:$0xf0] %vm322, %v320
        %v324 = vld [vmem:[%s245] sm:$0xf]
        %v326 = vunpack.c.l.b16 %v324
        %v327 = vpack.c.b16 %v326, %v326
        %328 = vrot.lane.b32.xlu0 %v327, 125
        %v329 = vpop.permute.xlu0 %328
        %vm331 = vcmask 1048556
        %332 = vst.msk [vmem:[#allocation2 + $0x8] sm:$0xf0] %vm331, %v329
        %v333 = vld [vmem:[%s2] sm:$0xf]
        %v334 = vld [vmem:[#allocation2] sm:$0xff]
        %v335 = vld [vmem:[#allocation2 + $0x8] sm:$0xff]
        %v336 = vld [vmem:[%s3] sm:$0xff]
        %338 = vset.pattern.permute.xlu0 0
        %339 = vperm.xlu0 %338, %v336
        %v340 = vpop.permute.xlu0 %339
        %vm342 = vcmask 261120
        %v344 = vsel %vm342, %v333, 0
        %346 = vmatprep.subr.bf16.mxu0 0
        %347 = vmatpush1.bf16.msra.mxu0 %v334
        %348 = vmatprep.subr.bf16.mxu0 0
        %349 = vmatpush1.bf16.msra.mxu0 %v335
        %350 = vmatprep.subr.bf16.mxu0 0
        %351 = vmatpush1.bf16.msra.mxu0 0
        %352 = vmatprep.subr.bf16.mxu0 0
        %353 = vmatpush1.bf16.msra.mxu0 0
        %354 = vmatprep.subr.bf16.mxu0 0
        %355 = vmatpush1.bf16.msra.mxu0 0
        %356 = vmatprep.subr.bf16.mxu0 0
        %357 = vmatpush1.bf16.msra.mxu0 0
        %358 = vmatprep.subr.bf16.mxu0 0
        %359 = vmatpush1.bf16.msra.mxu0 0
        %360 = vmatprep.subr.bf16.mxu0 0
        %361 = vmatpush1.bf16.msra.mxu0 0
        %362 = vmatprep.subr.bf16.mxu0 0
        %363 = vmatpush1.bf16.msra.mxu0 0
        %364 = vmatprep.subr.bf16.mxu0 0
        %365 = vmatpush1.bf16.msra.mxu0 0
        %366 = vmatprep.subr.bf16.mxu0 0
        %367 = vmatpush1.bf16.msra.mxu0 0
        %368 = vmatprep.subr.bf16.mxu0 0
        %369 = vmatpush1.bf16.msra.mxu0 0
        %370 = vmatprep.subr.bf16.mxu0 0
        %371 = vmatpush1.bf16.msra.mxu0 0
        %372 = vmatprep.subr.bf16.mxu0 0
        %373 = vmatpush1.bf16.msra.mxu0 0
        %374 = vmatprep.subr.bf16.mxu0 0
        %375 = vmatpush1.bf16.msra.mxu0 0
        %376 = vmatprep.subr.bf16.mxu0 0
        %377 = vmatpush1.bf16.msra.mxu0 0
        %378 = vmatprep.mubr.bf16.mxu0 0
        %379 = vmatmul.mubr.bf16.gmra.mrb[0].mxu0 %v344
        %v380 = vpop.f32.mrb[0].mxu0
        %v381 = vadd.f32 %v340, %v380
        %v382 = vpop.f32.mrb[0].mxu0
        %v383 = vpop.f32.mrb[0].mxu0
        %v384 = vpop.f32.mrb[0].mxu0
        %385 = vdwg.mxu0
        %386 = vst [vmem:[%s274] sm:$0xff] %v381
        %s387 = sand.u32 %s146, 1
        %s388 = scalar_lea.sflag [#allocation5], %s387
        %s389 = sand.u32 %s146, 1
        %s390 = smul.addr %s389, 8
        %s391 = scalar_lea.vmem [#allocation8], %s390
        // Predicated region
        $region45: #{tpu_custom_call.1} parent=35 // pred_check
          %p392 = pneg %p156
        $region46: #{tpu_custom_call.1} parent=35 // pred_check_branch
          %394 = sbr.rel (%p392) target = $region48
        $region47: #{tpu_custom_call.1} parent=35 // pred_region
          %s396 = ssub.s32 128, 128
          %397 = vsyncadd %s388, %s396
          %s398 = sadd.s32 %s29, %s28
          %s399 = smul.addr %s398, 128
          %s400 = scalar_lea.hbm %s4, %s399
          %s402 = sshll.u32 %s391, 4
          %s403 = int_to_ptr.vmem [resolvable:$true] %s402
          %405 = dma.vmem_to_hbm [thread:$0]  %s403, 128, %s400, %s388
        $region48: #{tpu_custom_call.1} parent=35 // pred_fallthru
          _
      $region36: #{tpu_custom_call.1} parent=5 // pred_fallthru
        _
      %p406 = scmp.le.s32.totalorder 2, %s19
      // Predicated region
      $region49: #{tpu_custom_call.1} parent=5 // pred_check
        %p407 = pneg %p406
      $region50: #{tpu_custom_call.1} parent=5 // pred_check_branch
        %409 = sbr.rel (%p407) target = $region52
      $region51: #{tpu_custom_call.1} parent=5 // pred_region
        %s410 = ssub.s32 %s19, 2
        // Predicated region
        $region53: #{tpu_custom_call.1} parent=51 // pred_check
          %p411 = pneg %p162
        $region54: #{tpu_custom_call.1} parent=51 // pred_check_branch
          %413 = sbr.rel (%p411) target = $region56
        $region55: #{tpu_custom_call.1} parent=51 // pred_region
          %s414 = sand.u32 %s147, 1
          %s415 = scalar_lea.sflag [#allocation5], %s414
          %s416 = sand.u32 %s147, 1
          %s417 = smul.addr %s416, 8
          %s418 = scalar_lea.vmem [#allocation8], %s417
          %419 = dma.done %s415, 128
        $region56: #{tpu_custom_call.1} parent=51 // pred_fallthru
          _
      $region52: #{tpu_custom_call.1} parent=5 // pred_fallthru
        _
    $region6: #{tpu_custom_call.1} parent=1 // loop_footer
      %s23 = sadd.s32 1, %s19
    $region7: #{tpu_custom_call.1} parent=1 // loop_footer_branch
      %18 = sbr.rel target = $region3
    $region8: #{tpu_custom_call.1} parent=1 // loop_exit
      _
    %420 = vsyncpa [#allocation4], 1
    %s421 = scalar_lea.sflag [#allocation4], 1
    %422 = vsyncpa %s421, 1
    %423 = vsyncpa [#allocation7], 1
    %s424 = scalar_lea.sflag [#allocation7], 1
    %425 = vsyncpa %s424, 1
    %426 = vsyncpa [#allocation5], 1
    %s427 = scalar_lea.sflag [#allocation5], 1
    %428 = vsyncpa %s427, 1

</llo_original>
